<compile_context>
chip_gen: v5e
topology: v5e:2x2
jax: 0.10.0
libtpu: 0.0.40
codegen_flags: <defaults>
</compile_context>

<pallas_src>
import functools

import numpy as np
import jax
import jax.numpy as jnp
from jax import lax
from jax.experimental import pallas as pl
from jax.experimental.pallas import tpu as pltpu


def basic_block_kernel(x_ref, mask_ref, w1_ref, b1_ref, w2_ref, b2_ref,
                       out_ref, *, width):
    # x_ref   : (1, Cin, L)   B lane-batched images, channels on sublanes, L=B*H*W
    # mask_ref: (9, L)        per-tap halo/wrap validity mask (0/1)
    # w1_ref  : (C, 9*Cin)    conv1 weights (BN1 scale folded in), tap-major K
    # b1_ref  : (C, 1)        folded BN1 bias
    # w2_ref  : (C, 9*C)      conv2 weights (BN2 scale folded in)
    # b2_ref  : (C, 1)        folded BN2 bias
    # out_ref : (1, C, L)
    L = out_ref.shape[2]
    x = x_ref[0]                                   # (Cin, L)

    # flattened-index shift for each 3x3 tap (dy, dx), dy/dx in {0,1,2}
    deltas = [(dy - 1) * width + (dx - 1) for dy in range(3) for dx in range(3)]

    def im2col(a):
        # 9 shifted copies stacked along sublanes; halo / cross-image wrapped
        # lanes zeroed via the per-tap mask (sublane-broadcast (1,L) -> (Cin,L)).
        pieces = []
        for t, d in enumerate(deltas):
            piece = a if d == 0 else pltpu.roll(a, (-d) % L, axis=1)
            if d != 0:                              # center tap mask is all-ones
                piece = piece * mask_ref[pl.ds(t, 1), :]
            pieces.append(piece)
        return jnp.concatenate(pieces, axis=0)      # (9*Cin, L)

    # conv1 (3x3, stride 1, pad 1) + BN (scale pre-folded) + ReLU
    acc1 = jnp.dot(w1_ref[...], im2col(x), preferred_element_type=jnp.float32)
    out1 = jnp.maximum(acc1 + b1_ref[...], 0.0)     # (C, L)

    # conv2 (3x3, stride 1, pad 1) + BN (scale pre-folded) + residual add
    acc2 = jnp.dot(w2_ref[...], im2col(out1), preferred_element_type=jnp.float32)
    out_ref[0] = acc2 + b2_ref[...] + x             # downsample=None -> identity


def prepare_basic_block_params(w1, s1, b1, w2, s2, b2):
    """One-time parameter prep (hoisted out of the per-call path).

    w*: HWIO (3,3,Cin,Cout); s*/b*: folded BN scale/bias per channel (C,).
    Returns weights reshaped to (Cout, 9*Cin) with the BN scale folded in, and
    biases as (C, 1) columns.
    """
    Cin = w1.shape[2]
    C = w1.shape[3]
    w1_mat = (jnp.transpose(w1, (3, 0, 1, 2)).reshape(C, 9 * Cin)
              * s1.reshape(C, 1)).astype(jnp.float32)
    w2_mat = (jnp.transpose(w2, (3, 0, 1, 2)).reshape(C, 9 * C)
              * s2.reshape(C, 1)).astype(jnp.float32)
    b1c = b1.reshape(C, 1).astype(jnp.float32)
    b2c = b2.reshape(C, 1).astype(jnp.float32)
    return w1_mat, b1c, w2_mat, b2c


def _pick_batch_per_step(n):
    # Largest B dividing N while keeping >= 2 grid steps (v7x megacore).
    if n < 2:
        return 1
    for b in range(n // 2, 0, -1):
        if n % b == 0:
            return b
    return 1


def _build_tap_mask(H, W, B):
    """(9, B*H*W) 0/1 validity mask per 3x3 tap over the lane-batched axis."""
    P = H * W
    pp = np.arange(P)
    yy = pp // W
    xx = pp % W
    rows = []
    for dy in range(3):
        for dx in range(3):
            m = np.ones((P,), np.float32)
            if dy == 0:
                m *= (yy >= 1)
            if dy == 2:
                m *= (yy <= H - 2)
            if dx == 0:
                m *= (xx >= 1)
            if dx == 2:
                m *= (xx <= W - 2)
            rows.append(m.astype(np.float32))
    mask9 = np.stack(rows, axis=0)                  # (9, P)
    return np.tile(mask9, (1, B))                   # (9, B*P)


def basic_block_pallas(x_nchw, params, *, batch_per_step=None):
    """x_nchw: (N, C, H, W) f32; params from prepare_basic_block_params().

    Returns (N, C, H, W) float32.
    """
    w1_mat, b1c, w2_mat, b2c = params
    N, Cin, H, W = x_nchw.shape
    C = w1_mat.shape[0]
    # downsample=None / stride=1 path only (matches the module construction).
    assert Cin == C, "identity residual requires inplanes == planes"
    P = H * W

    B = _pick_batch_per_step(N) if batch_per_step is None else batch_per_step
    assert N % B == 0
    G = N // B
    L = B * P

    # (N,C,H,W) -> (G, C, B*P): B images stacked along the lane axis.
    x_flat = x_nchw.reshape(G, B, Cin, P).transpose(0, 2, 1, 3).reshape(G, Cin, L)

    mask9 = jnp.asarray(_build_tap_mask(H, W, B))   # (9, L)

    kernel = functools.partial(basic_block_kernel, width=W)

    out = pl.pallas_call(
        kernel,
        out_shape=jax.ShapeDtypeStruct((G, C, L), jnp.float32),
        grid_spec=pltpu.PrefetchScalarGridSpec(
            num_scalar_prefetch=0,
            grid=(G,),                              # parallel over batch groups
            in_specs=[
                pl.BlockSpec((1, Cin, L), lambda g: (g, 0, 0)),
                pl.BlockSpec((9, L), lambda g: (0, 0)),
                pl.BlockSpec((C, 9 * Cin), lambda g: (0, 0)),
                pl.BlockSpec((C, 1), lambda g: (0, 0)),
                pl.BlockSpec((C, 9 * C), lambda g: (0, 0)),
                pl.BlockSpec((C, 1), lambda g: (0, 0)),
            ],
            out_specs=pl.BlockSpec((1, C, L), lambda g: (g, 0, 0)),
        ),
        compiler_params=pltpu.CompilerParams(
            dimension_semantics=("parallel",)),
    )(x_flat, mask9, w1_mat, b1c, w2_mat, b2c)

    return out.reshape(G, C, B, P).transpose(0, 2, 1, 3).reshape(N, C, H, W)


def reference_jax(x_nchw, w1, s1, b1, w2, s2, b2):
    """Plain-JAX reference (lax conv, NCHW) for validation."""
    dn = lax.conv_dimension_numbers(x_nchw.shape, w1.shape,
                                    ("NCHW", "HWIO", "NCHW"))
    y = lax.conv_general_dilated(x_nchw, w1, (1, 1), ((1, 1), (1, 1)),
                                 dimension_numbers=dn)
    y = jnp.maximum(y * s1.reshape(1, -1, 1, 1) + b1.reshape(1, -1, 1, 1), 0.0)
    y = lax.conv_general_dilated(y, w2, (1, 1), ((1, 1), (1, 1)),
                                 dimension_numbers=dn)
    y = y * s2.reshape(1, -1, 1, 1) + b2.reshape(1, -1, 1, 1)
    return y + x_nchw


if __name__ == "__main__":
    # Small shapes consistent with the module: inplanes=planes=8, stride=1.
    # N=4 exercises the lane-batched path (B=2 images/step, grid=(2,)).
    N, C, H, W = 4, 8, 16, 16
    key = jax.random.PRNGKey(0)
    k = jax.random.split(key, 8)

    x = jax.random.normal(k[0], (N, C, H, W), jnp.float32)

    # Conv weights in HWIO (3,3,Cin,Cout); deterministic init.
    w1 = jax.random.normal(k[1], (3, 3, C, C), jnp.float32) * 0.1
    w2 = jax.random.normal(k[2], (3, 3, C, C), jnp.float32) * 0.1

    # BatchNorm (inference) params folded to per-channel scale/bias.
    eps = 1e-5
    gamma1 = 1.0 + 0.1 * jax.random.normal(k[3], (C,), jnp.float32)
    beta1 = 0.1 * jax.random.normal(k[4], (C,), jnp.float32)
    mean1 = 0.05 * jax.random.normal(k[5], (C,), jnp.float32)
    var1 = jnp.abs(1.0 + 0.1 * jax.random.normal(k[6], (C,), jnp.float32))
    s1 = gamma1 / jnp.sqrt(var1 + eps)
    b1 = beta1 - mean1 * gamma1 / jnp.sqrt(var1 + eps)

    gamma2 = 1.0 + 0.1 * jax.random.normal(k[7], (C,), jnp.float32)
    beta2 = jnp.zeros((C,), jnp.float32)
    mean2 = jnp.zeros((C,), jnp.float32)
    var2 = jnp.ones((C,), jnp.float32)
    s2 = gamma2 / jnp.sqrt(var2 + eps)
    b2 = beta2 - mean2 * gamma2 / jnp.sqrt(var2 + eps)

    # One-time parameter prep (BN fold + HWIO -> (Cout, 9*Cin)).
    params = prepare_basic_block_params(w1, s1, b1, w2, s2, b2)

    out = basic_block_pallas(x, params)
    out = jax.block_until_ready(out)

    ref = jax.block_until_ready(reference_jax(x, w1, s1, b1, w2, s2, b2))
    assert out.shape == (N, C, H, W)
    assert jnp.allclose(out, ref, atol=2e-3, rtol=2e-3), "mismatch vs reference"

    print("KERNEL_OK")
</pallas_src>

<mosaic_0001>
module attributes {stable_mosaic.version = 11 : i64} {
  func.func @basic_block_kernel(%arg0: i32, %arg1: memref<1x8x512xf32, #tpu.memory_space<vmem>>, %arg2: memref<9x512xf32, #tpu.memory_space<vmem>>, %arg3: memref<8x72xf32, #tpu.memory_space<vmem>>, %arg4: memref<8x1xf32, #tpu.memory_space<vmem>>, %arg5: memref<8x72xf32, #tpu.memory_space<vmem>>, %arg6: memref<8x1xf32, #tpu.memory_space<vmem>>, %arg7: memref<1x8x512xf32, #tpu.memory_space<vmem>>) attributes {dimension_semantics = [#tpu.dimension_semantics<parallel>], iteration_bounds = array<i64: 2>, scalar_prefetch = 0 : i64, scratch_operands = 0 : i64, tpu.core_type = #tpu.core_type<tc>, window_params = [{transform_indices = @transform_0, window_bounds = array<i64: 1, 8, 512>}, {pipeline_mode = #tpu.pipeline_mode<synchronous>, transform_indices = @transform_1, window_bounds = array<i64: 9, 512>}, {pipeline_mode = #tpu.pipeline_mode<synchronous>, transform_indices = @transform_2, window_bounds = array<i64: 8, 72>}, {pipeline_mode = #tpu.pipeline_mode<synchronous>, transform_indices = @transform_3, window_bounds = array<i64: 8, 1>}, {pipeline_mode = #tpu.pipeline_mode<synchronous>, transform_indices = @transform_4, window_bounds = array<i64: 8, 72>}, {pipeline_mode = #tpu.pipeline_mode<synchronous>, transform_indices = @transform_5, window_bounds = array<i64: 8, 1>}, {transform_indices = @transform_6, window_bounds = array<i64: 1, 8, 512>}]} {
    %c0 = arith.constant 0 : index
    %c0_0 = arith.constant 0 : index
    %c0_1 = arith.constant 0 : index
    %0 = vector.load %arg1[%c0, %c0_0, %c0_1] : memref<1x8x512xf32, #tpu.memory_space<vmem>>, vector<1x8x512xf32>
    %1 = vector.shape_cast %0 : vector<1x8x512xf32> to vector<8x512xf32>
    %c0_2 = arith.constant 0 : index
    %c0_3 = arith.constant 0 : index
    %2 = vector.load %arg3[%c0_2, %c0_3] : memref<8x72xf32, #tpu.memory_space<vmem>>, vector<8x72xf32>
    %c17_i32 = arith.constant 17 : i32
    %3 = tpu.dynamic_rotate %1 by %c17_i32 dim 1 : vector<8x512xf32>, i32 -> vector<8x512xf32>
    %c0_4 = arith.constant 0 : index
    %c0_5 = arith.constant 0 : index
    %4 = vector.load %arg2[%c0_4, %c0_5] : memref<9x512xf32, #tpu.memory_space<vmem>>, vector<1x512xf32>
    %5 = vector.broadcast %4 : vector<1x512xf32> to vector<8x512xf32>
    %6 = arith.mulf %3, %5 : vector<8x512xf32>
    %c16_i32 = arith.constant 16 : i32
    %7 = tpu.dynamic_rotate %1 by %c16_i32 dim 1 : vector<8x512xf32>, i32 -> vector<8x512xf32>
    %c1 = arith.constant 1 : index
    %c0_6 = arith.constant 0 : index
    %8 = vector.load %arg2[%c1, %c0_6] : memref<9x512xf32, #tpu.memory_space<vmem>>, vector<1x512xf32>
    %9 = vector.broadcast %8 : vector<1x512xf32> to vector<8x512xf32>
    %10 = arith.mulf %7, %9 : vector<8x512xf32>
    %c15_i32 = arith.constant 15 : i32
    %11 = tpu.dynamic_rotate %1 by %c15_i32 dim 1 : vector<8x512xf32>, i32 -> vector<8x512xf32>
    %c2 = arith.constant 2 : index
    %c0_7 = arith.constant 0 : index
    %12 = vector.load %arg2[%c2, %c0_7] : memref<9x512xf32, #tpu.memory_space<vmem>>, vector<1x512xf32>
    %13 = vector.broadcast %12 : vector<1x512xf32> to vector<8x512xf32>
    %14 = arith.mulf %11, %13 : vector<8x512xf32>
    %c1_i32 = arith.constant 1 : i32
    %15 = tpu.dynamic_rotate %1 by %c1_i32 dim 1 : vector<8x512xf32>, i32 -> vector<8x512xf32>
    %c3 = arith.constant 3 : index
    %c0_8 = arith.constant 0 : index
    %16 = vector.load %arg2[%c3, %c0_8] : memref<9x512xf32, #tpu.memory_space<vmem>>, vector<1x512xf32>
    %17 = vector.broadcast %16 : vector<1x512xf32> to vector<8x512xf32>
    %18 = arith.mulf %15, %17 : vector<8x512xf32>
    %c511_i32 = arith.constant 511 : i32
    %19 = tpu.dynamic_rotate %1 by %c511_i32 dim 1 : vector<8x512xf32>, i32 -> vector<8x512xf32>
    %c5 = arith.constant 5 : index
    %c0_9 = arith.constant 0 : index
    %20 = vector.load %arg2[%c5, %c0_9] : memref<9x512xf32, #tpu.memory_space<vmem>>, vector<1x512xf32>
    %21 = vector.broadcast %20 : vector<1x512xf32> to vector<8x512xf32>
    %22 = arith.mulf %19, %21 : vector<8x512xf32>
    %c497_i32 = arith.constant 497 : i32
    %23 = tpu.dynamic_rotate %1 by %c497_i32 dim 1 : vector<8x512xf32>, i32 -> vector<8x512xf32>
    %c6 = arith.constant 6 : index
    %c0_10 = arith.constant 0 : index
    %24 = vector.load %arg2[%c6, %c0_10] : memref<9x512xf32, #tpu.memory_space<vmem>>, vector<1x512xf32>
    %25 = vector.broadcast %24 : vector<1x512xf32> to vector<8x512xf32>
    %26 = arith.mulf %23, %25 : vector<8x512xf32>
    %c496_i32 = arith.constant 496 : i32
    %27 = tpu.dynamic_rotate %1 by %c496_i32 dim 1 : vector<8x512xf32>, i32 -> vector<8x512xf32>
    %c7 = arith.constant 7 : index
    %c0_11 = arith.constant 0 : index
    %28 = vector.load %arg2[%c7, %c0_11] : memref<9x512xf32, #tpu.memory_space<vmem>>, vector<1x512xf32>
    %29 = vector.broadcast %28 : vector<1x512xf32> to vector<8x512xf32>
    %30 = arith.mulf %27, %29 : vector<8x512xf32>
    %c495_i32 = arith.constant 495 : i32
    %31 = tpu.dynamic_rotate %1 by %c495_i32 dim 1 : vector<8x512xf32>, i32 -> vector<8x512xf32>
    %c8 = arith.constant 8 : index
    %c0_12 = arith.constant 0 : index
    %32 = vector.load %arg2[%c8, %c0_12] : memref<9x512xf32, #tpu.memory_space<vmem>>, vector<1x512xf32>
    %33 = vector.broadcast %32 : vector<1x512xf32> to vector<8x512xf32>
    %34 = arith.mulf %31, %33 : vector<8x512xf32>
    %35 = tpu.concatenate %6, %10, %14, %18, %1, %22, %26, %30, %34 in 0 : vector<8x512xf32>, vector<8x512xf32>, vector<8x512xf32>, vector<8x512xf32>, vector<8x512xf32>, vector<8x512xf32>, vector<8x512xf32>, vector<8x512xf32>, vector<8x512xf32> -> vector<72x512xf32>
    %cst = arith.constant dense<0.000000e+00> : vector<8x512xf32>
    %36 = tpu.matmul %2, %35, %cst {dimension_numbers = #tpu.dot_dimension_numbers<[1], [0], [0], [1], [0, 0, 1, 1], [], []>} : vector<8x72xf32>, vector<72x512xf32>, vector<8x512xf32> -> vector<8x512xf32>
    %c0_13 = arith.constant 0 : index
    %c0_14 = arith.constant 0 : index
    %37 = vector.load %arg4[%c0_13, %c0_14] : memref<8x1xf32, #tpu.memory_space<vmem>>, vector<8x1xf32>
    %38 = vector.broadcast %37 : vector<8x1xf32> to vector<8x512xf32>
    %39 = arith.addf %36, %38 : vector<8x512xf32>
    %cst_15 = arith.constant 0.000000e+00 : f32
    %40 = vector.broadcast %cst_15 : f32 to vector<8x512xf32>
    %41 = arith.maximumf %39, %40 : vector<8x512xf32>
    %c0_16 = arith.constant 0 : index
    %c0_17 = arith.constant 0 : index
    %42 = vector.load %arg5[%c0_16, %c0_17] : memref<8x72xf32, #tpu.memory_space<vmem>>, vector<8x72xf32>
    %c17_i32_18 = arith.constant 17 : i32
    %43 = tpu.dynamic_rotate %41 by %c17_i32_18 dim 1 : vector<8x512xf32>, i32 -> vector<8x512xf32>
    %c0_19 = arith.constant 0 : index
    %c0_20 = arith.constant 0 : index
    %44 = vector.load %arg2[%c0_19, %c0_20] : memref<9x512xf32, #tpu.memory_space<vmem>>, vector<1x512xf32>
    %45 = vector.broadcast %44 : vector<1x512xf32> to vector<8x512xf32>
    %46 = arith.mulf %43, %45 : vector<8x512xf32>
    %c16_i32_21 = arith.constant 16 : i32
    %47 = tpu.dynamic_rotate %41 by %c16_i32_21 dim 1 : vector<8x512xf32>, i32 -> vector<8x512xf32>
    %c1_22 = arith.constant 1 : index
    %c0_23 = arith.constant 0 : index
    %48 = vector.load %arg2[%c1_22, %c0_23] : memref<9x512xf32, #tpu.memory_space<vmem>>, vector<1x512xf32>
    %49 = vector.broadcast %48 : vector<1x512xf32> to vector<8x512xf32>
    %50 = arith.mulf %47, %49 : vector<8x512xf32>
    %c15_i32_24 = arith.constant 15 : i32
    %51 = tpu.dynamic_rotate %41 by %c15_i32_24 dim 1 : vector<8x512xf32>, i32 -> vector<8x512xf32>
    %c2_25 = arith.constant 2 : index
    %c0_26 = arith.constant 0 : index
    %52 = vector.load %arg2[%c2_25, %c0_26] : memref<9x512xf32, #tpu.memory_space<vmem>>, vector<1x512xf32>
    %53 = vector.broadcast %52 : vector<1x512xf32> to vector<8x512xf32>
    %54 = arith.mulf %51, %53 : vector<8x512xf32>
    %c1_i32_27 = arith.constant 1 : i32
    %55 = tpu.dynamic_rotate %41 by %c1_i32_27 dim 1 : vector<8x512xf32>, i32 -> vector<8x512xf32>
    %c3_28 = arith.constant 3 : index
    %c0_29 = arith.constant 0 : index
    %56 = vector.load %arg2[%c3_28, %c0_29] : memref<9x512xf32, #tpu.memory_space<vmem>>, vector<1x512xf32>
    %57 = vector.broadcast %56 : vector<1x512xf32> to vector<8x512xf32>
    %58 = arith.mulf %55, %57 : vector<8x512xf32>
    %c511_i32_30 = arith.constant 511 : i32
    %59 = tpu.dynamic_rotate %41 by %c511_i32_30 dim 1 : vector<8x512xf32>, i32 -> vector<8x512xf32>
    %c5_31 = arith.constant 5 : index
    %c0_32 = arith.constant 0 : index
    %60 = vector.load %arg2[%c5_31, %c0_32] : memref<9x512xf32, #tpu.memory_space<vmem>>, vector<1x512xf32>
    %61 = vector.broadcast %60 : vector<1x512xf32> to vector<8x512xf32>
    %62 = arith.mulf %59, %61 : vector<8x512xf32>
    %c497_i32_33 = arith.constant 497 : i32
    %63 = tpu.dynamic_rotate %41 by %c497_i32_33 dim 1 : vector<8x512xf32>, i32 -> vector<8x512xf32>
    %c6_34 = arith.constant 6 : index
    %c0_35 = arith.constant 0 : index
    %64 = vector.load %arg2[%c6_34, %c0_35] : memref<9x512xf32, #tpu.memory_space<vmem>>, vector<1x512xf32>
    %65 = vector.broadcast %64 : vector<1x512xf32> to vector<8x512xf32>
    %66 = arith.mulf %63, %65 : vector<8x512xf32>
    %c496_i32_36 = arith.constant 496 : i32
    %67 = tpu.dynamic_rotate %41 by %c496_i32_36 dim 1 : vector<8x512xf32>, i32 -> vector<8x512xf32>
    %c7_37 = arith.constant 7 : index
    %c0_38 = arith.constant 0 : index
    %68 = vector.load %arg2[%c7_37, %c0_38] : memref<9x512xf32, #tpu.memory_space<vmem>>, vector<1x512xf32>
    %69 = vector.broadcast %68 : vector<1x512xf32> to vector<8x512xf32>
    %70 = arith.mulf %67, %69 : vector<8x512xf32>
    %c495_i32_39 = arith.constant 495 : i32
    %71 = tpu.dynamic_rotate %41 by %c495_i32_39 dim 1 : vector<8x512xf32>, i32 -> vector<8x512xf32>
    %c8_40 = arith.constant 8 : index
    %c0_41 = arith.constant 0 : index
    %72 = vector.load %arg2[%c8_40, %c0_41] : memref<9x512xf32, #tpu.memory_space<vmem>>, vector<1x512xf32>
    %73 = vector.broadcast %72 : vector<1x512xf32> to vector<8x512xf32>
    %74 = arith.mulf %71, %73 : vector<8x512xf32>
    %75 = tpu.concatenate %46, %50, %54, %58, %41, %62, %66, %70, %74 in 0 : vector<8x512xf32>, vector<8x512xf32>, vector<8x512xf32>, vector<8x512xf32>, vector<8x512xf32>, vector<8x512xf32>, vector<8x512xf32>, vector<8x512xf32>, vector<8x512xf32> -> vector<72x512xf32>
    %cst_42 = arith.constant dense<0.000000e+00> : vector<8x512xf32>
    %76 = tpu.matmul %42, %75, %cst_42 {dimension_numbers = #tpu.dot_dimension_numbers<[1], [0], [0], [1], [0, 0, 1, 1], [], []>} : vector<8x72xf32>, vector<72x512xf32>, vector<8x512xf32> -> vector<8x512xf32>
    %c0_43 = arith.constant 0 : index
    %c0_44 = arith.constant 0 : index
    %77 = vector.load %arg6[%c0_43, %c0_44] : memref<8x1xf32, #tpu.memory_space<vmem>>, vector<8x1xf32>
    %78 = vector.broadcast %77 : vector<8x1xf32> to vector<8x512xf32>
    %79 = arith.addf %76, %78 : vector<8x512xf32>
    %80 = arith.addf %79, %1 : vector<8x512xf32>
    %c0_45 = arith.constant 0 : index
    %c0_46 = arith.constant 0 : index
    %c0_47 = arith.constant 0 : index
    %81 = vector.load %arg7[%c0_45, %c0_46, %c0_47] : memref<1x8x512xf32, #tpu.memory_space<vmem>>, vector<1x8x512xf32>
    %82 = vector.shape_cast %81 : vector<1x8x512xf32> to vector<8x512xf32>
    %83 = vector.shape_cast %80 : vector<8x512xf32> to vector<1x8x512xf32>
    tpu.vector_store %arg7[%c0_45, %c0_46, %c0_47], %83 {strides = array<i32>} : memref<1x8x512xf32, #tpu.memory_space<vmem>>, vector<1x8x512xf32>,
    return
  }
  func.func @transform_0(%arg0: i32) -> (i32, i32, i32) {
    %c0_i32 = arith.constant 0 : i32
    %c0_i32_0 = arith.constant 0 : i32
    %c0_i32_1 = arith.constant 0 : i32
    return %arg0, %c0_i32, %c0_i32_0 : i32, i32, i32
  }
  func.func @transform_1(%arg0: i32) -> (i32, i32) {
    %c0_i32 = arith.constant 0 : i32
    %c0_i32_0 = arith.constant 0 : i32
    %c0_i32_1 = arith.constant 0 : i32
    return %c0_i32, %c0_i32_0 : i32, i32
  }
  func.func @transform_2(%arg0: i32) -> (i32, i32) {
    %c0_i32 = arith.constant 0 : i32
    %c0_i32_0 = arith.constant 0 : i32
    %c0_i32_1 = arith.constant 0 : i32
    return %c0_i32, %c0_i32_0 : i32, i32
  }
  func.func @transform_3(%arg0: i32) -> (i32, i32) {
    %c0_i32 = arith.constant 0 : i32
    %c0_i32_0 = arith.constant 0 : i32
    %c0_i32_1 = arith.constant 0 : i32
    return %c0_i32, %c0_i32_0 : i32, i32
  }
  func.func @transform_4(%arg0: i32) -> (i32, i32) {
    %c0_i32 = arith.constant 0 : i32
    %c0_i32_0 = arith.constant 0 : i32
    %c0_i32_1 = arith.constant 0 : i32
    return %c0_i32, %c0_i32_0 : i32, i32
  }
  func.func @transform_5(%arg0: i32) -> (i32, i32) {
    %c0_i32 = arith.constant 0 : i32
    %c0_i32_0 = arith.constant 0 : i32
    %c0_i32_1 = arith.constant 0 : i32
    return %c0_i32, %c0_i32_0 : i32, i32
  }
  func.func @transform_6(%arg0: i32) -> (i32, i32, i32) {
    %c0_i32 = arith.constant 0 : i32
    %c0_i32_0 = arith.constant 0 : i32
    %c0_i32_1 = arith.constant 0 : i32
    return %arg0, %c0_i32, %c0_i32_0 : i32, i32, i32
  }
}

</mosaic_0001>

<llo_original>
// kernel: tpu_custom_call.1
$region0: #{tpu_custom_call.1}
  #allocation0 [shape = 'u32[]', space=smem, size = 0x4, offset = 0x4, fixed_abs, tag = 'smem constant byte address 0x4 - core index']
  #allocation1 [shape = 'u32[72,128]{1,0:T(1,128)}', space=vmem, size = 0x9000, scoped, tag = 'internal scratch']
  %s0 = inlined_call_operand.hbm [shape: f32[2,8,512], index: 0, kind: input, shape index: {}]
  %s1 = inlined_call_operand.hbm [shape: f32[9,512], index: 1, kind: input, shape index: {}]
  %s2 = inlined_call_operand.vmem [shape: f32[8,72], index: 2, kind: input, shape index: {}]
  %s3 = inlined_call_operand.vmem [shape: f32[8,1], index: 3, kind: input, shape index: {}]
  %s4 = inlined_call_operand.vmem [shape: f32[8,72], index: 4, kind: input, shape index: {}]
  %s5 = inlined_call_operand.vmem [shape: f32[8,1], index: 5, kind: input, shape index: {}]
  %s6 = inlined_call_operand.hbm [shape: f32[2,8,512], index: 6, kind: output, shape index: {}]
  %s7 = sld [smem:[#allocation0]]
  $region65: #{tpu_custom_call.1} parent=0
    _
  %s9 = ssub.s32 1, %s7
  %s10 = scalar_select 0, %s9, %s7
  $region1: #{tpu_custom_call.1} parent=0
    #allocation2 [shape = 'u8[32768]{0}', space=vmem, size = 0x8000, scoped, tag = 'input window, operand 0']
    #allocation3 [shape = 's32[2]{0}', space=sflag, size = 0x8, scoped, tag = 'scoped memory for tpu_custom_call.1']
    #allocation4 [shape = 's32[2]{0}', space=sflag, size = 0x8, scoped, tag = 'scoped memory for tpu_custom_call.1']
    #allocation5 [shape = 'u8[32768]{0}', space=vmem, size = 0x8000, scoped, tag = 'input window, operand 1, single buffered']
    #allocation6 [shape = 's32[1]{0}', space=sflag, size = 0x4, scoped, tag = 'scoped memory for tpu_custom_call.1']
    #allocation7 [shape = 'u8[32768]{0}', space=vmem, size = 0x8000, scoped, tag = 'output window, operand 0']
    %11 = vsyncpa [#allocation3], 0
    %s12 = scalar_lea.sflag [#allocation3], 1
    %13 = vsyncpa %s12, 0
    %14 = vsyncpa [#allocation6], 0
    %15 = vsyncpa [#allocation4], 0
    %s16 = scalar_lea.sflag [#allocation4], 1
    %17 = vsyncpa %s16, 0
    loop: start=0, step=1, limit=4
    $region2: #{tpu_custom_call.1} parent=1 // loop_pre_header
      _
    $region3: #{tpu_custom_call.1} parent=1 // loop_header
      %s19 = sphi 0, %s23
      %p20 = scmp.ge.s32.totalorder %s19, 4
      %s29 = sphi 0, %s31
      %s32 = sphi 0, %s29
      %s33 = sphi 0, %s32
      %s49 = sphi 0, %s33
      %s53 = sphi 0, %s53
      %s55 = sphi 0, %s53
      %s56 = sphi 0, %s55
      %s70 = sphi 0, %s56
      %s74 = sphi 0, %s74
      %s76 = sphi 0, %s74
      %s77 = sphi 0, %s76
      %s91 = sphi 0, %s77
      %s95 = sphi 0, %s95
      %s97 = sphi 0, %s95
      %s98 = sphi 0, %s97
      %s112 = sphi 0, %s98
      %s116 = sphi 0, %s116
      %s118 = sphi 0, %s116
      %s119 = sphi 0, %s118
      %s133 = sphi 0, %s119
      %s137 = sphi 0, %s137
      %s139 = sphi 0, %s137
      %s140 = sphi 0, %s139
      %s154 = sphi 0, %s140
      %s160 = sphi 0, %s162
      %s163 = sphi 0, %s160
      %s164 = sphi 0, %s163
      %s180 = sphi 0, %s164
    $region4: #{tpu_custom_call.1} parent=1 // loop_header_branch
      %22 = sbr.rel (%p20) target = $region8
    $region5: #{tpu_custom_call.1} parent=1 // loop_body
      %s24 = ssub.s32 %s19, 1
      %s25 = ssub.s32 %s19, 2
      %s26 = sadd.s32 %s19, 1
      %s27 = ssub.s32 %s19, %s26
      %p28 = scmp.eq.s32.totalorder %s27, 0
      %s30 = sadd.s32 %s29, 1
      %s31 = scalar_select %p28, %s29, %s30
      %p34 = pneg %p28
      %p35 = scmp.eq.s32.totalorder %s19, 1
      %p36 = por %p34, %p35
      %p37 = scmp.ne.s32.totalorder %s29, %s32
      %p38 = scmp.eq.s32.totalorder %s19, 0
      %p39 = por %p37, %p38
      %p40 = scmp.ne.s32.totalorder %s29, %s32
      %p41 = scmp.eq.s32.totalorder %s24, 1
      %p42 = por %p40, %p41
      %p43 = scmp.ne.s32.totalorder %s32, %s33
      %p44 = scmp.eq.s32.totalorder %s24, 0
      %p45 = por %p43, %p44
      %p46 = scmp.ne.s32.totalorder %s32, %s33
      %p47 = scmp.eq.s32.totalorder %s25, 1
      %p48 = por %p46, %p47
      %p50 = scmp.ne.s32.totalorder %s33, %s49
      %p51 = scmp.eq.s32.totalorder %s25, 0
      %p52 = por %p50, %p51
      %s54 = sadd.s32 %s53, 1
      %p57 = scmp.eq.s32.totalorder %s19, 1
      %p58 = scmp.ne.s32.totalorder %s53, %s55
      %p59 = scmp.eq.s32.totalorder %s19, 0
      %p60 = por %p58, %p59
      %p61 = scmp.ne.s32.totalorder %s53, %s55
      %p62 = scmp.eq.s32.totalorder %s24, 1
      %p63 = por %p61, %p62
      %p64 = scmp.ne.s32.totalorder %s55, %s56
      %p65 = scmp.eq.s32.totalorder %s24, 0
      %p66 = por %p64, %p65
      %p67 = scmp.ne.s32.totalorder %s55, %s56
      %p68 = scmp.eq.s32.totalorder %s25, 1
      %p69 = por %p67, %p68
      %p71 = scmp.ne.s32.totalorder %s56, %s70
      %p72 = scmp.eq.s32.totalorder %s25, 0
      %p73 = por %p71, %p72
      %s75 = sadd.s32 %s74, 1
      %p78 = scmp.eq.s32.totalorder %s19, 1
      %p79 = scmp.ne.s32.totalorder %s74, %s76
      %p80 = scmp.eq.s32.totalorder %s19, 0
      %p81 = por %p79, %p80
      %p82 = scmp.ne.s32.totalorder %s74, %s76
      %p83 = scmp.eq.s32.totalorder %s24, 1
      %p84 = por %p82, %p83
      %p85 = scmp.ne.s32.totalorder %s76, %s77
      %p86 = scmp.eq.s32.totalorder %s24, 0
      %p87 = por %p85, %p86
      %p88 = scmp.ne.s32.totalorder %s76, %s77
      %p89 = scmp.eq.s32.totalorder %s25, 1
      %p90 = por %p88, %p89
      %p92 = scmp.ne.s32.totalorder %s77, %s91
      %p93 = scmp.eq.s32.totalorder %s25, 0
      %p94 = por %p92, %p93
      %s96 = sadd.s32 %s95, 1
      %p99 = scmp.eq.s32.totalorder %s19, 1
      %p100 = scmp.ne.s32.totalorder %s95, %s97
      %p101 = scmp.eq.s32.totalorder %s19, 0
      %p102 = por %p100, %p101
      %p103 = scmp.ne.s32.totalorder %s95, %s97
      %p104 = scmp.eq.s32.totalorder %s24, 1
      %p105 = por %p103, %p104
      %p106 = scmp.ne.s32.totalorder %s97, %s98
      %p107 = scmp.eq.s32.totalorder %s24, 0
      %p108 = por %p106, %p107
      %p109 = scmp.ne.s32.totalorder %s97, %s98
      %p110 = scmp.eq.s32.totalorder %s25, 1
      %p111 = por %p109, %p110
      %p113 = scmp.ne.s32.totalorder %s98, %s112
      %p114 = scmp.eq.s32.totalorder %s25, 0
      %p115 = por %p113, %p114
      %s117 = sadd.s32 %s116, 1
      %p120 = scmp.eq.s32.totalorder %s19, 1
      %p121 = scmp.ne.s32.totalorder %s116, %s118
      %p122 = scmp.eq.s32.totalorder %s19, 0
      %p123 = por %p121, %p122
      %p124 = scmp.ne.s32.totalorder %s116, %s118
      %p125 = scmp.eq.s32.totalorder %s24, 1
      %p126 = por %p124, %p125
      %p127 = scmp.ne.s32.totalorder %s118, %s119
      %p128 = scmp.eq.s32.totalorder %s24, 0
      %p129 = por %p127, %p128
      %p130 = scmp.ne.s32.totalorder %s118, %s119
      %p131 = scmp.eq.s32.totalorder %s25, 1
      %p132 = por %p130, %p131
      %p134 = scmp.ne.s32.totalorder %s119, %s133
      %p135 = scmp.eq.s32.totalorder %s25, 0
      %p136 = por %p134, %p135
      %s138 = sadd.s32 %s137, 1
      %p141 = scmp.eq.s32.totalorder %s19, 1
      %p142 = scmp.ne.s32.totalorder %s137, %s139
      %p143 = scmp.eq.s32.totalorder %s19, 0
      %p144 = por %p142, %p143
      %p145 = scmp.ne.s32.totalorder %s137, %s139
      %p146 = scmp.eq.s32.totalorder %s24, 1
      %p147 = por %p145, %p146
      %p148 = scmp.ne.s32.totalorder %s139, %s140
      %p149 = scmp.eq.s32.totalorder %s24, 0
      %p150 = por %p148, %p149
      %p151 = scmp.ne.s32.totalorder %s139, %s140
      %p152 = scmp.eq.s32.totalorder %s25, 1
      %p153 = por %p151, %p152
      %p155 = scmp.ne.s32.totalorder %s140, %s154
      %p156 = scmp.eq.s32.totalorder %s25, 0
      %p157 = por %p155, %p156
      %s158 = ssub.s32 %s19, %s26
      %p159 = scmp.eq.s32.totalorder %s158, 0
      %s161 = sadd.s32 %s160, 1
      %s162 = scalar_select %p159, %s160, %s161
      %p165 = pneg %p159
      %p166 = scmp.eq.s32.totalorder %s19, 1
      %p167 = por %p165, %p166
      %p168 = scmp.ne.s32.totalorder %s160, %s163
      %p169 = scmp.eq.s32.totalorder %s19, 0
      %p170 = por %p168, %p169
      %p171 = scmp.ne.s32.totalorder %s160, %s163
      %p172 = scmp.eq.s32.totalorder %s24, 1
      %p173 = por %p171, %p172
      %p174 = scmp.ne.s32.totalorder %s163, %s164
      %p175 = scmp.eq.s32.totalorder %s24, 0
      %p176 = por %p174, %p175
      %p177 = scmp.ne.s32.totalorder %s163, %s164
      %p178 = scmp.eq.s32.totalorder %s25, 1
      %p179 = por %p177, %p178
      %p181 = scmp.ne.s32.totalorder %s164, %s180
      %p182 = scmp.eq.s32.totalorder %s25, 0
      %p183 = por %p181, %p182
      %p184 = scmp.le.s32.totalorder 1, %s19
      %p185 = scmp.lt.s32.totalorder %s19, 3
      %p186 = pnand %p184, %p185
      %p187 = pneg %p186
      // Predicated region
      $region9: #{tpu_custom_call.1} parent=5 // pred_check
        _
      $region10: #{tpu_custom_call.1} parent=5 // pred_check_branch
        %189 = sbr.rel (%p186) target = $region12
      $region11: #{tpu_custom_call.1} parent=5 // pred_region
        %s190 = ssub.s32 %s19, 1
        // Predicated region
        $region13: #{tpu_custom_call.1} parent=11 // pred_check
          %p191 = pneg %p66
        $region14: #{tpu_custom_call.1} parent=11 // pred_check_branch
          %193 = sbr.rel (%p191) target = $region16
        $region15: #{tpu_custom_call.1} parent=11 // pred_region
          %195 = vsyncadd [#allocation6], 0
          %s196 = sshll.u32 %s1, 4
          %s197 = int_to_ptr.hbm [resolvable:$true] %s196
          %s198 = sshll.u32 [#allocation5], 4
          %s199 = int_to_ptr.vmem [resolvable:$true] %s198
          %204 = dma.hbm_to_vmem [thread:$0]  %s197, 1024, %s199, [#allocation6], 512, 512, 32
        $region16: #{tpu_custom_call.1} parent=11 // pred_fallthru
          _
        // Predicated region
        $region17: #{tpu_custom_call.1} parent=11 // pred_check
          %p205 = pneg %p87
        $region18: #{tpu_custom_call.1} parent=11 // pred_check_branch
          %207 = sbr.rel (%p205) target = $region20
        $region19: #{tpu_custom_call.1} parent=11 // pred_region
          _
        $region20: #{tpu_custom_call.1} parent=11 // pred_fallthru
          _
        // Predicated region
        $region21: #{tpu_custom_call.1} parent=11 // pred_check
          %p208 = pneg %p108
        $region22: #{tpu_custom_call.1} parent=11 // pred_check_branch
          %210 = sbr.rel (%p208) target = $region24
        $region23: #{tpu_custom_call.1} parent=11 // pred_region
          _
        $region24: #{tpu_custom_call.1} parent=11 // pred_fallthru
          _
        // Predicated region
        $region25: #{tpu_custom_call.1} parent=11 // pred_check
          %p211 = pneg %p129
        $region26: #{tpu_custom_call.1} parent=11 // pred_check_branch
          %213 = sbr.rel (%p211) target = $region28
        $region27: #{tpu_custom_call.1} parent=11 // pred_region
          _
        $region28: #{tpu_custom_call.1} parent=11 // pred_fallthru
          _
        // Predicated region
        $region29: #{tpu_custom_call.1} parent=11 // pred_check
          %p214 = pneg %p150
        $region30: #{tpu_custom_call.1} parent=11 // pred_check_branch
          %216 = sbr.rel (%p214) target = $region32
        $region31: #{tpu_custom_call.1} parent=11 // pred_region
          _
        $region32: #{tpu_custom_call.1} parent=11 // pred_fallthru
          _
      $region12: #{tpu_custom_call.1} parent=5 // pred_fallthru
        _
      %p217 = scmp.lt.s32.totalorder %s19, 2
      // Predicated region
      $region33: #{tpu_custom_call.1} parent=5 // pred_check
        %p218 = pneg %p217
      $region34: #{tpu_custom_call.1} parent=5 // pred_check_branch
        %220 = sbr.rel (%p218) target = $region36
      $region35: #{tpu_custom_call.1} parent=5 // pred_region
        // Predicated region
        $region37: #{tpu_custom_call.1} parent=35 // pred_check
          %p221 = pneg %p39
        $region38: #{tpu_custom_call.1} parent=35 // pred_check_branch
          %223 = sbr.rel (%p221) target = $region40
        $region39: #{tpu_custom_call.1} parent=35 // pred_region
          %s224 = sand.u32 %s29, 1
          %s225 = scalar_lea.sflag [#allocation3], %s224
          %s226 = sand.u32 %s29, 1
          %s227 = smul.addr %s226, 32
          %s228 = scalar_lea.vmem [#allocation2], %s227
          %230 = vsyncadd %s225, 0
          %s231 = smul.addr %s19, 4
          %s232 = smul.addr %s231, 8
          %s233 = scalar_lea.hbm %s0, %s232
          %s235 = sshll.u32 %s233, 4
          %s236 = int_to_ptr.hbm [resolvable:$true] %s235
          %s237 = sshll.u32 %s228, 4
          %s238 = int_to_ptr.vmem [resolvable:$true] %s237
          %240 = dma.hbm_to_vmem [thread:$0]  %s236, 512, %s238, %s225
        $region40: #{tpu_custom_call.1} parent=35 // pred_fallthru
          _
      $region36: #{tpu_custom_call.1} parent=5 // pred_fallthru
        _
      %p241 = scmp.le.s32.totalorder 1, %s19
      %p242 = scmp.lt.s32.totalorder %s19, 3
      %p243 = pnand %p241, %p242
      %p244 = pneg %p243
      // Predicated region
      $region41: #{tpu_custom_call.1} parent=5 // pred_check
        _
      $region42: #{tpu_custom_call.1} parent=5 // pred_check_branch
        %246 = sbr.rel (%p243) target = $region44
      $region43: #{tpu_custom_call.1} parent=5 // pred_region
        %s247 = ssub.s32 %s19, 1
        %s248 = sand.u32 %s32, 1
        %s249 = scalar_lea.sflag [#allocation3], %s248
        %s250 = sand.u32 %s32, 1
        %s251 = smul.addr %s250, 32
        %s252 = scalar_lea.vmem [#allocation2], %s251
        // Predicated region
        $region45: #{tpu_custom_call.1} parent=43 // pred_check
          %p253 = pneg %p45
        $region46: #{tpu_custom_call.1} parent=43 // pred_check_branch
          %255 = sbr.rel (%p253) target = $region48
        $region47: #{tpu_custom_call.1} parent=43 // pred_region
          %257 = dma.done %s249, 512
        $region48: #{tpu_custom_call.1} parent=43 // pred_fallthru
          _
        // Predicated region
        $region49: #{tpu_custom_call.1} parent=43 // pred_check
          %p258 = pneg %p66
        $region50: #{tpu_custom_call.1} parent=43 // pred_check_branch
          %260 = sbr.rel (%p258) target = $region52
        $region51: #{tpu_custom_call.1} parent=43 // pred_region
          %262 = dma.done [#allocation6], 1024
        $region52: #{tpu_custom_call.1} parent=43 // pred_fallthru
          _
        %s263 = sand.u32 %s32, 1
        %s264 = scalar_lea.sflag [#allocation3], %s263
        %s265 = sand.u32 %s32, 1
        %s266 = smul.addr %s265, 32
        %s267 = scalar_lea.vmem [#allocation2], %s266
        %p268 = pneg %p45
        %p269 = pneg %p42
        %p270 = pneg %p66
        %p271 = pneg %p63
        %p272 = pneg %p87
        %p273 = pneg %p84
        %p274 = pneg %p108
        %p275 = pneg %p105
        %p276 = pneg %p129
        %p277 = pneg %p126
        %p278 = pneg %p150
        %p279 = pneg %p147
        %p280 = pneg %p176
        %p281 = pneg %p173
        %s282 = sand.u32 %s163, 1
        %s283 = scalar_lea.sflag [#allocation4], %s282
        %s284 = sand.u32 %s163, 1
        %s285 = smul.addr %s284, 32
        %s286 = scalar_lea.vmem [#allocation7], %s285
        %v287 = vld [vmem:[%s252] sm:$0xff]
        %v288 = vld [vmem:[%s252 + $0x8] sm:$0xff]
        %v289 = vld [vmem:[%s252 + $0x10] sm:$0xff]
        %v290 = vld [vmem:[%s252 + $0x18] sm:$0xff]
        %v291 = vld [vmem:[%s2] sm:$0xff]
        %292 = vrot.lane.b32.xlu0 %v287, 17
        %v293 = vpop.permute.xlu0 %292
        %294 = vrot.lane.b32.xlu0 %v288, 17
        %v295 = vpop.permute.xlu0 %294
        %296 = vrot.lane.b32.xlu0 %v289, 17
        %v297 = vpop.permute.xlu0 %296
        %298 = vrot.lane.b32.xlu0 %v290, 17
        %v299 = vpop.permute.xlu0 %298
        %v300 = vlaneseq
        %v301 = vand.u32 %v300, 127
        %vm302 = vcmp.lt.s32.totalorder %v301, 17
        %v303 = vsel %vm302, %v297, %v299
        %v304 = vsel %vm302, %v295, %v297
        %v305 = vsel %vm302, %v293, %v295
        %v306 = vsel %vm302, %v299, %v293
        %v307 = vld [vmem:[#allocation5] ss:$8 sm:$0xf]
        %v309 = vperm.slane %v307, 0
        %v310 = vperm.slane %v307, 1
        %v311 = vperm.slane %v307, 2
        %v312 = vperm.slane %v307, 3
        %v317 = vmul.f32 %v306, %v309
        %v318 = vmul.f32 %v305, %v310
        %v319 = vmul.f32 %v304, %v311
        %v320 = vmul.f32 %v303, %v312
        %321 = vrot.lane.b32.xlu0 %v287, 16
        %v322 = vpop.permute.xlu0 %321
        %323 = vrot.lane.b32.xlu0 %v288, 16
        %v324 = vpop.permute.xlu0 %323
        %325 = vrot.lane.b32.xlu0 %v289, 16
        %v326 = vpop.permute.xlu0 %325
        %327 = vrot.lane.b32.xlu0 %v290, 16
        %v328 = vpop.permute.xlu0 %327
        %vm329 = vcmp.lt.s32.totalorder %v301, 16
        %v330 = vsel %vm329, %v326, %v328
        %v331 = vsel %vm329, %v324, %v326
        %v332 = vsel %vm329, %v322, %v324
        %v333 = vsel %vm329, %v328, %v322
        %s334 = scalar_lea.vmem [#allocation5], 1
        %v335 = vld [vmem:[%s334] ss:$8 sm:$0xf]
        %v337 = vperm.slane %v335, 0
        %v338 = vperm.slane %v335, 1
        %v339 = vperm.slane %v335, 2
        %v340 = vperm.slane %v335, 3
        %v345 = vmul.f32 %v333, %v337
        %v346 = vmul.f32 %v332, %v338
        %v347 = vmul.f32 %v331, %v339
        %v348 = vmul.f32 %v330, %v340
        %349 = vrot.lane.b32.xlu0 %v287, 15
        %v350 = vpop.permute.xlu0 %349
        %351 = vrot.lane.b32.xlu0 %v288, 15
        %v352 = vpop.permute.xlu0 %351
        %353 = vrot.lane.b32.xlu0 %v289, 15
        %v354 = vpop.permute.xlu0 %353
        %355 = vrot.lane.b32.xlu0 %v290, 15
        %v356 = vpop.permute.xlu0 %355
        %vm357 = vcmp.lt.s32.totalorder %v301, 15
        %v358 = vsel %vm357, %v354, %v356
        %v359 = vsel %vm357, %v352, %v354
        %v360 = vsel %vm357, %v350, %v352
        %v361 = vsel %vm357, %v356, %v350
        %s362 = scalar_lea.vmem [#allocation5], 2
        %v363 = vld [vmem:[%s362] ss:$8 sm:$0xf]
        %v365 = vperm.slane %v363, 0
        %v366 = vperm.slane %v363, 1
        %v367 = vperm.slane %v363, 2
        %v368 = vperm.slane %v363, 3
        %v373 = vmul.f32 %v361, %v365
        %v374 = vmul.f32 %v360, %v366
        %v375 = vmul.f32 %v359, %v367
        %v376 = vmul.f32 %v358, %v368
        %377 = vrot.lane.b32.xlu0 %v287, 1
        %v378 = vpop.permute.xlu0 %377
        %379 = vrot.lane.b32.xlu0 %v288, 1
        %v380 = vpop.permute.xlu0 %379
        %381 = vrot.lane.b32.xlu0 %v289, 1
        %v382 = vpop.permute.xlu0 %381
        %383 = vrot.lane.b32.xlu0 %v290, 1
        %v384 = vpop.permute.xlu0 %383
        %vm385 = vcmp.lt.s32.totalorder %v301, 1
        %v386 = vsel %vm385, %v382, %v384
        %v387 = vsel %vm385, %v380, %v382
        %v388 = vsel %vm385, %v378, %v380
        %v389 = vsel %vm385, %v384, %v378
        %s390 = scalar_lea.vmem [#allocation5], 3
        %v391 = vld [vmem:[%s390] ss:$8 sm:$0xf]
        %v393 = vperm.slane %v391, 0
        %v394 = vperm.slane %v391, 1
        %v395 = vperm.slane %v391, 2
        %v396 = vperm.slane %v391, 3
        %v401 = vmul.f32 %v389, %v393
        %v402 = vmul.f32 %v388, %v394
        %v403 = vmul.f32 %v387, %v395
        %v404 = vmul.f32 %v386, %v396
        %405 = vrot.lane.b32.xlu0 %v287, 127
        %v406 = vpop.permute.xlu0 %405
        %407 = vrot.lane.b32.xlu0 %v288, 127
        %v408 = vpop.permute.xlu0 %407
        %409 = vrot.lane.b32.xlu0 %v289, 127
        %v410 = vpop.permute.xlu0 %409
        %411 = vrot.lane.b32.xlu0 %v290, 127
        %v412 = vpop.permute.xlu0 %411
        %vm413 = vcmp.lt.s32.totalorder %v301, 127
        %v414 = vsel %vm413, %v410, %v412
        %v415 = vsel %vm413, %v408, %v410
        %v416 = vsel %vm413, %v406, %v408
        %v417 = vsel %vm413, %v412, %v406
        %s418 = scalar_lea.vmem [#allocation5], 5
        %v419 = vld [vmem:[%s418] ss:$8 sm:$0xf]
        %v421 = vperm.slane %v419, 0
        %v422 = vperm.slane %v419, 1
        %v423 = vperm.slane %v419, 2
        %v424 = vperm.slane %v419, 3
        %v429 = vmul.f32 %v416, %v421
        %v430 = vmul.f32 %v415, %v422
        %v431 = vmul.f32 %v414, %v423
        %v432 = vmul.f32 %v417, %v424
        %433 = vrot.lane.b32.xlu0 %v287, 113
        %v434 = vpop.permute.xlu0 %433
        %435 = vrot.lane.b32.xlu0 %v288, 113
        %v436 = vpop.permute.xlu0 %435
        %437 = vrot.lane.b32.xlu0 %v289, 113
        %v438 = vpop.permute.xlu0 %437
        %439 = vrot.lane.b32.xlu0 %v290, 113
        %v440 = vpop.permute.xlu0 %439
        %vm441 = vcmp.lt.s32.totalorder %v301, 113
        %v442 = vsel %vm441, %v438, %v440
        %v443 = vsel %vm441, %v436, %v438
        %v444 = vsel %vm441, %v434, %v436
        %v445 = vsel %vm441, %v440, %v434
        %s446 = scalar_lea.vmem [#allocation5], 6
        %v447 = vld [vmem:[%s446] ss:$8 sm:$0xf]
        %v449 = vperm.slane %v447, 0
        %v450 = vperm.slane %v447, 1
        %v451 = vperm.slane %v447, 2
        %v452 = vperm.slane %v447, 3
        %v457 = vmul.f32 %v444, %v449
        %v458 = vmul.f32 %v443, %v450
        %v459 = vmul.f32 %v442, %v451
        %v460 = vmul.f32 %v445, %v452
        %461 = vrot.lane.b32.xlu0 %v287, 112
        %v462 = vpop.permute.xlu0 %461
        %463 = vrot.lane.b32.xlu0 %v288, 112
        %v464 = vpop.permute.xlu0 %463
        %465 = vrot.lane.b32.xlu0 %v289, 112
        %v466 = vpop.permute.xlu0 %465
        %467 = vrot.lane.b32.xlu0 %v290, 112
        %v468 = vpop.permute.xlu0 %467
        %vm469 = vcmp.lt.s32.totalorder %v301, 112
        %v470 = vsel %vm469, %v466, %v468
        %v471 = vsel %vm469, %v464, %v466
        %v472 = vsel %vm469, %v462, %v464
        %v473 = vsel %vm469, %v468, %v462
        %s474 = scalar_lea.vmem [#allocation5], 7
        %v475 = vld [vmem:[%s474] ss:$8 sm:$0xf]
        %v477 = vperm.slane %v475, 0
        %v478 = vperm.slane %v475, 1
        %v479 = vperm.slane %v475, 2
        %v480 = vperm.slane %v475, 3
        %v485 = vmul.f32 %v472, %v477
        %v486 = vmul.f32 %v471, %v478
        %v487 = vmul.f32 %v470, %v479
        %v488 = vmul.f32 %v473, %v480
        %489 = vrot.lane.b32.xlu0 %v287, 111
        %v490 = vpop.permute.xlu0 %489
        %491 = vrot.lane.b32.xlu0 %v288, 111
        %v492 = vpop.permute.xlu0 %491
        %493 = vrot.lane.b32.xlu0 %v289, 111
        %v494 = vpop.permute.xlu0 %493
        %495 = vrot.lane.b32.xlu0 %v290, 111
        %v496 = vpop.permute.xlu0 %495
        %vm497 = vcmp.lt.s32.totalorder %v301, 111
        %v498 = vsel %vm497, %v494, %v496
        %v499 = vsel %vm497, %v492, %v494
        %v500 = vsel %vm497, %v490, %v492
        %v501 = vsel %vm497, %v496, %v490
        %s502 = scalar_lea.vmem [#allocation5], 32
        %v503 = vld [vmem:[%s502] ss:$8 sm:$0xf]
        %v505 = vperm.slane %v503, 0
        %v506 = vperm.slane %v503, 1
        %v507 = vperm.slane %v503, 2
        %v508 = vperm.slane %v503, 3
        %v513 = vmul.f32 %v500, %v505
        %v514 = vmul.f32 %v499, %v506
        %v515 = vmul.f32 %v498, %v507
        %v516 = vmul.f32 %v501, %v508
        %v517 = vld [vmem:[%s3] sm:$0xff]
        %519 = vset.pattern.permute.xlu0 0
        %520 = vperm.xlu0 %519, %v517
        %v521 = vpop.permute.xlu0 %520
        %vm523 = vcmask 588800
        %v525 = vsel %vm523, %v291, 0
        %527 = vmatpush.msra.mxu0 0.0
        %528 = vmatpush.msra.mxu0 0.0
        %529 = vmatpush.msra.mxu0 0.0
        %530 = vmatpush.msra.mxu0 0.0
        %531 = vmatpush.msra.mxu0 0.0
        %532 = vmatpush.msra.mxu0 0.0
        %533 = vmatpush.msra.mxu0 0.0
        %534 = vmatpush.msra.mxu0 %v513
        %535 = vmatpush.msra.mxu0 %v485
        %536 = vmatpush.msra.mxu0 %v457
        %537 = vmatpush.msra.mxu0 %v429
        %538 = vmatpush.msra.mxu0 %v287
        %539 = vmatpush.msra.mxu0 %v401
        %540 = vmatpush.msra.mxu0 %v373
        %541 = vmatpush.msra.mxu0 %v345
        %542 = vmatpush.msra.mxu0 %v317
        %543 = vmatmul.f32.gmra.mxu0 %v525
        %v544 = vpop.f32.mrf.mxu0
        %v545 = vadd.f32 %v521, %v544
        %546 = vdwg.mxu0
        %547 = vmatpush.msra.mxu0 0.0
        %548 = vmatpush.msra.mxu0 0.0
        %549 = vmatpush.msra.mxu0 0.0
        %550 = vmatpush.msra.mxu0 0.0
        %551 = vmatpush.msra.mxu0 0.0
        %552 = vmatpush.msra.mxu0 0.0
        %553 = vmatpush.msra.mxu0 0.0
        %554 = vmatpush.msra.mxu0 %v514
        %555 = vmatpush.msra.mxu0 %v486
        %556 = vmatpush.msra.mxu0 %v458
        %557 = vmatpush.msra.mxu0 %v430
        %558 = vmatpush.msra.mxu0 %v288
        %559 = vmatpush.msra.mxu0 %v402
        %560 = vmatpush.msra.mxu0 %v374
        %561 = vmatpush.msra.mxu0 %v346
        %562 = vmatpush.msra.mxu0 %v318
        %563 = vmatmul.f32.gmra.mxu0 %v525
        %v564 = vpop.f32.mrf.mxu0
        %v565 = vadd.f32 %v521, %v564
        %566 = vdwg.mxu0
        %567 = vmatpush.msra.mxu0 0.0
        %568 = vmatpush.msra.mxu0 0.0
        %569 = vmatpush.msra.mxu0 0.0
        %570 = vmatpush.msra.mxu0 0.0
        %571 = vmatpush.msra.mxu0 0.0
        %572 = vmatpush.msra.mxu0 0.0
        %573 = vmatpush.msra.mxu0 0.0
        %574 = vmatpush.msra.mxu0 %v515
        %575 = vmatpush.msra.mxu0 %v487
        %576 = vmatpush.msra.mxu0 %v459
        %577 = vmatpush.msra.mxu0 %v431
        %578 = vmatpush.msra.mxu0 %v289
        %579 = vmatpush.msra.mxu0 %v403
        %580 = vmatpush.msra.mxu0 %v375
        %581 = vmatpush.msra.mxu0 %v347
        %582 = vmatpush.msra.mxu0 %v319
        %583 = vmatmul.f32.gmra.mxu0 %v525
        %v584 = vpop.f32.mrf.mxu0
        %v585 = vadd.f32 %v521, %v584
        %586 = vdwg.mxu0
        %587 = vmatpush.msra.mxu0 0.0
        %588 = vmatpush.msra.mxu0 0.0
        %589 = vmatpush.msra.mxu0 0.0
        %590 = vmatpush.msra.mxu0 0.0
        %591 = vmatpush.msra.mxu0 0.0
        %592 = vmatpush.msra.mxu0 0.0
        %593 = vmatpush.msra.mxu0 0.0
        %594 = vmatpush.msra.mxu0 %v516
        %595 = vmatpush.msra.mxu0 %v488
        %596 = vmatpush.msra.mxu0 %v460
        %597 = vmatpush.msra.mxu0 %v432
        %598 = vmatpush.msra.mxu0 %v290
        %599 = vmatpush.msra.mxu0 %v404
        %600 = vmatpush.msra.mxu0 %v376
        %601 = vmatpush.msra.mxu0 %v348
        %602 = vmatpush.msra.mxu0 %v320
        %603 = vmatmul.f32.gmra.mxu0 %v525
        %v604 = vpop.f32.mrf.mxu0
        %v605 = vadd.f32 %v521, %v604
        %606 = vdwg.mxu0
        %v607 = vmax.f32 %v545, 0.0
        %v608 = vmax.f32 %v565, 0.0
        %v609 = vmax.f32 %v585, 0.0
        %v610 = vmax.f32 %v605, 0.0
        %v611 = vld [vmem:[%s4] sm:$0xff]
        %612 = vrot.lane.b32.xlu0 %v607, 17
        %v613 = vpop.permute.xlu0 %612
        %614 = vrot.lane.b32.xlu0 %v608, 17
        %v615 = vpop.permute.xlu0 %614
        %616 = vrot.lane.b32.xlu0 %v609, 17
        %v617 = vpop.permute.xlu0 %616
        %618 = vrot.lane.b32.xlu0 %v610, 17
        %v619 = vpop.permute.xlu0 %618
        %v620 = vsel %vm302, %v617, %v619
        %v621 = vsel %vm302, %v615, %v617
        %v622 = vsel %vm302, %v613, %v615
        %v623 = vsel %vm302, %v619, %v613
        %v624 = vmul.f32 %v623, %v309
        %v625 = vmul.f32 %v622, %v310
        %v626 = vmul.f32 %v621, %v311
        %v627 = vmul.f32 %v620, %v312
        %628 = vrot.lane.b32.xlu0 %v607, 16
        %v629 = vpop.permute.xlu0 %628
        %630 = vrot.lane.b32.xlu0 %v608, 16
        %v631 = vpop.permute.xlu0 %630
        %632 = vrot.lane.b32.xlu0 %v609, 16
        %v633 = vpop.permute.xlu0 %632
        %634 = vrot.lane.b32.xlu0 %v610, 16
        %v635 = vpop.permute.xlu0 %634
        %v636 = vsel %vm329, %v633, %v635
        %v637 = vsel %vm329, %v631, %v633
        %v638 = vsel %vm329, %v629, %v631
        %v639 = vsel %vm329, %v635, %v629
        %v640 = vmul.f32 %v639, %v337
        %v641 = vmul.f32 %v638, %v338
        %v642 = vmul.f32 %v637, %v339
        %v643 = vmul.f32 %v636, %v340
        %644 = vrot.lane.b32.xlu0 %v607, 15
        %v645 = vpop.permute.xlu0 %644
        %646 = vrot.lane.b32.xlu0 %v608, 15
        %v647 = vpop.permute.xlu0 %646
        %648 = vrot.lane.b32.xlu0 %v609, 15
        %v649 = vpop.permute.xlu0 %648
        %650 = vrot.lane.b32.xlu0 %v610, 15
        %v651 = vpop.permute.xlu0 %650
        %v652 = vsel %vm357, %v649, %v651
        %v653 = vsel %vm357, %v647, %v649
        %v654 = vsel %vm357, %v645, %v647
        %v655 = vsel %vm357, %v651, %v645
        %v656 = vmul.f32 %v655, %v365
        %v657 = vmul.f32 %v654, %v366
        %v658 = vmul.f32 %v653, %v367
        %v659 = vmul.f32 %v652, %v368
        %660 = vrot.lane.b32.xlu0 %v607, 1
        %v661 = vpop.permute.xlu0 %660
        %662 = vrot.lane.b32.xlu0 %v608, 1
        %v663 = vpop.permute.xlu0 %662
        %664 = vrot.lane.b32.xlu0 %v609, 1
        %v665 = vpop.permute.xlu0 %664
        %666 = vrot.lane.b32.xlu0 %v610, 1
        %v667 = vpop.permute.xlu0 %666
        %v668 = vsel %vm385, %v665, %v667
        %v669 = vsel %vm385, %v663, %v665
        %v670 = vsel %vm385, %v661, %v663
        %v671 = vsel %vm385, %v667, %v661
        %v672 = vmul.f32 %v671, %v393
        %v673 = vmul.f32 %v670, %v394
        %v674 = vmul.f32 %v669, %v395
        %v675 = vmul.f32 %v668, %v396
        %676 = vrot.lane.b32.xlu0 %v607, 127
        %v677 = vpop.permute.xlu0 %676
        %678 = vrot.lane.b32.xlu0 %v608, 127
        %v679 = vpop.permute.xlu0 %678
        %680 = vrot.lane.b32.xlu0 %v609, 127
        %v681 = vpop.permute.xlu0 %680
        %682 = vrot.lane.b32.xlu0 %v610, 127
        %v683 = vpop.permute.xlu0 %682
        %v684 = vsel %vm413, %v681, %v683
        %v685 = vsel %vm413, %v679, %v681
        %v686 = vsel %vm413, %v677, %v679
        %v687 = vsel %vm413, %v683, %v677
        %v688 = vmul.f32 %v686, %v421
        %v689 = vmul.f32 %v685, %v422
        %v690 = vmul.f32 %v684, %v423
        %v691 = vmul.f32 %v687, %v424
        %692 = vrot.lane.b32.xlu0 %v607, 113
        %v693 = vpop.permute.xlu0 %692
        %694 = vrot.lane.b32.xlu0 %v608, 113
        %v695 = vpop.permute.xlu0 %694
        %696 = vrot.lane.b32.xlu0 %v609, 113
        %v697 = vpop.permute.xlu0 %696
        %698 = vrot.lane.b32.xlu0 %v610, 113
        %v699 = vpop.permute.xlu0 %698
        %v700 = vsel %vm441, %v697, %v699
        %v701 = vsel %vm441, %v695, %v697
        %v702 = vsel %vm441, %v693, %v695
        %v703 = vsel %vm441, %v699, %v693
        %v704 = vmul.f32 %v702, %v449
        %v705 = vmul.f32 %v701, %v450
        %v706 = vmul.f32 %v700, %v451
        %v707 = vmul.f32 %v703, %v452
        %708 = vrot.lane.b32.xlu0 %v607, 112
        %v709 = vpop.permute.xlu0 %708
        %710 = vrot.lane.b32.xlu0 %v608, 112
        %v711 = vpop.permute.xlu0 %710
        %712 = vrot.lane.b32.xlu0 %v609, 112
        %v713 = vpop.permute.xlu0 %712
        %714 = vrot.lane.b32.xlu0 %v610, 112
        %v715 = vpop.permute.xlu0 %714
        %v716 = vsel %vm469, %v713, %v715
        %v717 = vsel %vm469, %v711, %v713
        %v718 = vsel %vm469, %v709, %v711
        %v719 = vsel %vm469, %v715, %v709
        %v720 = vmul.f32 %v718, %v477
        %v721 = vmul.f32 %v717, %v478
        %v722 = vmul.f32 %v716, %v479
        %v723 = vmul.f32 %v719, %v480
        %724 = vrot.lane.b32.xlu0 %v607, 111
        %v725 = vpop.permute.xlu0 %724
        %726 = vrot.lane.b32.xlu0 %v608, 111
        %v727 = vpop.permute.xlu0 %726
        %728 = vrot.lane.b32.xlu0 %v609, 111
        %v729 = vpop.permute.xlu0 %728
        %730 = vrot.lane.b32.xlu0 %v610, 111
        %v731 = vpop.permute.xlu0 %730
        %v732 = vsel %vm497, %v729, %v731
        %v733 = vsel %vm497, %v727, %v729
        %v734 = vsel %vm497, %v725, %v727
        %v735 = vsel %vm497, %v731, %v725
        %v736 = vmul.f32 %v734, %v505
        %v737 = vmul.f32 %v733, %v506
        %v738 = vmul.f32 %v732, %v507
        %v739 = vmul.f32 %v735, %v508
        %v740 = vld [vmem:[%s5] sm:$0xff]
        %742 = vset.pattern.permute.xlu0 0
        %743 = vperm.xlu0 %742, %v740
        %v744 = vpop.permute.xlu0 %743
        %v747 = vsel %vm523, %v611, 0
        %749 = vmatpush.msra.mxu0 0.0
        %750 = vmatpush.msra.mxu0 0.0
        %751 = vmatpush.msra.mxu0 0.0
        %752 = vmatpush.msra.mxu0 0.0
        %753 = vmatpush.msra.mxu0 0.0
        %754 = vmatpush.msra.mxu0 0.0
        %755 = vmatpush.msra.mxu0 0.0
        %756 = vmatpush.msra.mxu0 %v736
        %757 = vmatpush.msra.mxu0 %v720
        %758 = vmatpush.msra.mxu0 %v704
        %759 = vmatpush.msra.mxu0 %v688
        %760 = vmatpush.msra.mxu0 %v607
        %761 = vmatpush.msra.mxu0 %v672
        %762 = vmatpush.msra.mxu0 %v656
        %763 = vmatpush.msra.mxu0 %v640
        %764 = vmatpush.msra.mxu0 %v624
        %765 = vmatmul.f32.gmra.mxu0 %v747
        %v766 = vpop.f32.mrf.mxu0
        %v767 = vadd.f32 %v744, %v766
        %768 = vdwg.mxu0
        %769 = vmatpush.msra.mxu0 0.0
        %770 = vmatpush.msra.mxu0 0.0
        %771 = vmatpush.msra.mxu0 0.0
        %772 = vmatpush.msra.mxu0 0.0
        %773 = vmatpush.msra.mxu0 0.0
        %774 = vmatpush.msra.mxu0 0.0
        %775 = vmatpush.msra.mxu0 0.0
        %776 = vmatpush.msra.mxu0 %v737
        %777 = vmatpush.msra.mxu0 %v721
        %778 = vmatpush.msra.mxu0 %v705
        %779 = vmatpush.msra.mxu0 %v689
        %780 = vmatpush.msra.mxu0 %v608
        %781 = vmatpush.msra.mxu0 %v673
        %782 = vmatpush.msra.mxu0 %v657
        %783 = vmatpush.msra.mxu0 %v641
        %784 = vmatpush.msra.mxu0 %v625
        %785 = vmatmul.f32.gmra.mxu0 %v747
        %v786 = vpop.f32.mrf.mxu0
        %v787 = vadd.f32 %v744, %v786
        %788 = vdwg.mxu0
        %789 = vmatpush.msra.mxu0 0.0
        %790 = vmatpush.msra.mxu0 0.0
        %791 = vmatpush.msra.mxu0 0.0
        %792 = vmatpush.msra.mxu0 0.0
        %793 = vmatpush.msra.mxu0 0.0
        %794 = vmatpush.msra.mxu0 0.0
        %795 = vmatpush.msra.mxu0 0.0
        %796 = vmatpush.msra.mxu0 %v738
        %797 = vmatpush.msra.mxu0 %v722
        %798 = vmatpush.msra.mxu0 %v706
        %799 = vmatpush.msra.mxu0 %v690
        %800 = vmatpush.msra.mxu0 %v609
        %801 = vmatpush.msra.mxu0 %v674
        %802 = vmatpush.msra.mxu0 %v658
        %803 = vmatpush.msra.mxu0 %v642
        %804 = vmatpush.msra.mxu0 %v626
        %805 = vmatmul.f32.gmra.mxu0 %v747
        %v806 = vpop.f32.mrf.mxu0
        %v807 = vadd.f32 %v744, %v806
        %808 = vdwg.mxu0
        %809 = vmatpush.msra.mxu0 0.0
        %810 = vmatpush.msra.mxu0 0.0
        %811 = vmatpush.msra.mxu0 0.0
        %812 = vmatpush.msra.mxu0 0.0
        %813 = vmatpush.msra.mxu0 0.0
        %814 = vmatpush.msra.mxu0 0.0
        %815 = vmatpush.msra.mxu0 0.0
        %816 = vmatpush.msra.mxu0 %v739
        %817 = vmatpush.msra.mxu0 %v723
        %818 = vmatpush.msra.mxu0 %v707
        %819 = vmatpush.msra.mxu0 %v691
        %820 = vmatpush.msra.mxu0 %v610
        %821 = vmatpush.msra.mxu0 %v675
        %822 = vmatpush.msra.mxu0 %v659
        %823 = vmatpush.msra.mxu0 %v643
        %824 = vmatpush.msra.mxu0 %v627
        %825 = vmatmul.f32.gmra.mxu0 %v747
        %v826 = vpop.f32.mrf.mxu0
        %v827 = vadd.f32 %v744, %v826
        %828 = vdwg.mxu0
        %v829 = vadd.f32 %v767, %v287
        %v830 = vadd.f32 %v787, %v288
        %v831 = vadd.f32 %v807, %v289
        %v832 = vadd.f32 %v827, %v290
        %833 = vst [vmem:[%s286] sm:$0xff] %v829
        %834 = vst [vmem:[%s286 + $0x8] sm:$0xff] %v830
        %835 = vst [vmem:[%s286 + $0x10] sm:$0xff] %v831
        %836 = vst [vmem:[%s286 + $0x18] sm:$0xff] %v832
        %s837 = sand.u32 %s163, 1
        %s838 = scalar_lea.sflag [#allocation4], %s837
        %s839 = sand.u32 %s163, 1
        %s840 = smul.addr %s839, 32
        %s841 = scalar_lea.vmem [#allocation7], %s840
        // Predicated region
        $region53: #{tpu_custom_call.1} parent=43 // pred_check
          %p842 = pneg %p173
        $region54: #{tpu_custom_call.1} parent=43 // pred_check_branch
          %844 = sbr.rel (%p842) target = $region56
        $region55: #{tpu_custom_call.1} parent=43 // pred_region
          %846 = vsyncadd %s838, 0
          %s847 = smul.addr %s24, 4
          %s848 = smul.addr %s847, 8
          %s849 = scalar_lea.hbm %s6, %s848
          %s851 = sshll.u32 %s841, 4
          %s852 = int_to_ptr.vmem [resolvable:$true] %s851
          %s853 = sshll.u32 %s849, 4
          %s854 = int_to_ptr.hbm [resolvable:$true] %s853
          %856 = dma.vmem_to_hbm [thread:$0]  %s852, 512, %s854, %s838
        $region56: #{tpu_custom_call.1} parent=43 // pred_fallthru
          _
      $region44: #{tpu_custom_call.1} parent=5 // pred_fallthru
        _
      %p857 = scmp.le.s32.totalorder 2, %s19
      // Predicated region
      $region57: #{tpu_custom_call.1} parent=5 // pred_check
        %p858 = pneg %p857
      $region58: #{tpu_custom_call.1} parent=5 // pred_check_branch
        %860 = sbr.rel (%p858) target = $region60
      $region59: #{tpu_custom_call.1} parent=5 // pred_region
        %s861 = ssub.s32 %s19, 2
        // Predicated region
        $region61: #{tpu_custom_call.1} parent=59 // pred_check
          %p862 = pneg %p179
        $region62: #{tpu_custom_call.1} parent=59 // pred_check_branch
          %864 = sbr.rel (%p862) target = $region64
        $region63: #{tpu_custom_call.1} parent=59 // pred_region
          %s865 = sand.u32 %s164, 1
          %s866 = scalar_lea.sflag [#allocation4], %s865
          %s867 = sand.u32 %s164, 1
          %s868 = smul.addr %s867, 32
          %s869 = scalar_lea.vmem [#allocation7], %s868
          %871 = dma.done %s866, 512
        $region64: #{tpu_custom_call.1} parent=59 // pred_fallthru
          _
      $region60: #{tpu_custom_call.1} parent=5 // pred_fallthru
        _
    $region6: #{tpu_custom_call.1} parent=1 // loop_footer
      %s23 = sadd.s32 1, %s19
    $region7: #{tpu_custom_call.1} parent=1 // loop_footer_branch
      %18 = sbr.rel target = $region3
    $region8: #{tpu_custom_call.1} parent=1 // loop_exit
      _
    %872 = vsyncpa [#allocation3], 1
    %s873 = scalar_lea.sflag [#allocation3], 1
    %874 = vsyncpa %s873, 1
    %875 = vsyncpa [#allocation6], 1
    %876 = vsyncpa [#allocation4], 1
    %s877 = scalar_lea.sflag [#allocation4], 1
    %878 = vsyncpa %s877, 1

</llo_original>
